<compile_context>
chip_gen: v7x
topology: tpu7x:2x2x1
jax: 0.10.0
libtpu: 0.0.40
codegen_flags: <defaults>
</compile_context>

<pallas_src>
import jax
import jax.numpy as jnp
import jax.scipy.linalg as jsp_linalg
from jax import lax
from jax.experimental import pallas as pl
from jax.experimental.pallas import tpu as pltpu


def _round_up(x, m):
    return (x + m - 1) // m * m


def _cdiv(a, b):
    return -(-a // b)


_MAX_ROW_TILE = 512   # ~85% of HBM pipelining roofline vs ~63% at 256-row tiles.


def _support_row_tiling(n):
    """Adaptive tiling of the support rows.

    Returns (tile, n_pad, num_parallel, blocks_per_core) such that
    n_pad = tile * num_parallel * blocks_per_core >= n and every block is
    either the full extent or a multiple of 8 rows.
    """
    n = max(int(n), 1)
    if n <= _MAX_ROW_TILE:
        return n, n, 1, 1                       # one full-extent block, no padding
    nblk = _cdiv(n, _MAX_ROW_TILE)
    if nblk % 2:
        nblk += 1                               # even #blocks -> 2-way core split (v7x)
    tile = _round_up(_cdiv(n, nblk), 8)
    return tile, tile * nblk, 2, nblk // 2


# ----------------------------------------------------------------------------
# Kernel 1 (fused gram): G = SXY^T SXY, tiled & accumulated over support rows.
#   SXY = [Xs | 1(optional) | Ys | 0-pad]  ->  G[:D1,:D1] = Xs'^T Xs'
#                                               G[:D1,D1:D1+K] = Xs'^T Ys
# ----------------------------------------------------------------------------
def _gram_kernel(sxy_ref, g_ref):
    @pl.when(pl.program_id(1) == 0)
    def _init():
        g_ref[...] = jnp.zeros_like(g_ref)

    x = sxy_ref[...]                            # (tile, C) in original dtype
    # Contract the row axis directly (no materialized transpose), f32 accumulate.
    g_ref[...] += lax.dot_general(
        x, x, (((0,), (0,)), ((), ())),
        preferred_element_type=jnp.float32)


def _gram(sxy, *, tile, num_parallel, blocks_per_core):
    n_pad, c = sxy.shape
    assert n_pad == tile * num_parallel * blocks_per_core

    out = pl.pallas_call(
        _gram_kernel,
        out_shape=jax.ShapeDtypeStruct((num_parallel * c, c), jnp.float32),
        grid=(num_parallel, blocks_per_core),
        in_specs=[
            pl.BlockSpec((tile, c),
                         lambda p, j: (p * blocks_per_core + j, 0)),
        ],
        out_specs=pl.BlockSpec((c, c), lambda p, j: (p, 0)),
        compiler_params=pltpu.CompilerParams(
            dimension_semantics=("parallel", "arbitrary")),
    )(sxy)

    if num_parallel == 1:
        return out
    # Combine per-TensorCore partial grams (tiny (C,C) add).
    return out.reshape(num_parallel, c, c).sum(axis=0)


# ----------------------------------------------------------------------------
# Kernel 2 (predict): y_hat = Xq @ W + b, tiled over query rows ("parallel").
# Xq is streamed unpadded in its original dtype; the intercept is the bias b.
# ----------------------------------------------------------------------------
def _predict_kernel(qx_ref, w_ref, b_ref, out_ref):
    acc = jnp.dot(qx_ref[...], w_ref[...], preferred_element_type=jnp.float32)
    out_ref[...] = (acc + b_ref[...]).astype(out_ref.dtype)


def _predict(query_x, w, bias):
    m, d = query_x.shape
    k = w.shape[1]
    tm = m if m <= _MAX_ROW_TILE else _MAX_ROW_TILE
    grid = (_cdiv(m, tm),)   # final partial block (if any) is boundary-masked by Pallas
    return pl.pallas_call(
        _predict_kernel,
        out_shape=jax.ShapeDtypeStruct((m, k), query_x.dtype),
        grid=grid,
        in_specs=[
            pl.BlockSpec((tm, d), lambda i: (i, 0)),
            pl.BlockSpec((d, k), lambda i: (0, 0)),
            pl.BlockSpec((1, k), lambda i: (0, 0)),
        ],
        out_specs=pl.BlockSpec((tm, k), lambda i: (i, 0)),
        compiler_params=pltpu.CompilerParams(
            dimension_semantics=("parallel",)),
    )(query_x, w, bias)


# ----------------------------------------------------------------------------
# Module wrapper
# ----------------------------------------------------------------------------
def ridge_regression_header(support_x, support_y, query_x,
                            alpha=1.0, fit_intercept=True):
    """Pallas implementation of RidgeRegressionHeader.forward (2-D inputs).

    `alpha` / `fit_intercept` are static Python values (fixed at construction
    time in the PyTorch module).
    """
    n, d = support_x.shape
    k = support_y.shape[1]

    d1 = d + 1 if fit_intercept else d
    c = d1 + k
    c_pad = _round_up(c, 128)     # lane-aligned packed width (shared by Xs, 1, Ys)

    tile, n_pad, num_parallel, blocks_per_core = _support_row_tiling(n)

    in_dtype = support_x.dtype
    # Packed support operand [Xs | 1 | Ys | 0-pad] in the caller's dtype.  One
    # copy serves the intercept column, the fused single-matmul gram and the
    # (zero, reduction-transparent) row padding.
    sxy = jnp.zeros((n_pad, c_pad), in_dtype)
    sxy = sxy.at[:n, :d].set(support_x)
    if fit_intercept:
        sxy = sxy.at[:n, d].set(1.0)
    sxy = sxy.at[:n, d1:c].set(support_y.astype(in_dtype))

    # Kernel 1: fused gram (reduction over support rows, 2-way parallel if big).
    g = _gram(sxy, tile=tile, num_parallel=num_parallel,
              blocks_per_core=blocks_per_core)

    cov = g[:d1, :d1] + jnp.float32(alpha) * jnp.eye(d1, dtype=jnp.float32)
    xty = g[:d1, d1:c]

    # Small (D1, D1) solve stays in plain JAX.  For alpha > 0, cov is SPD, so a
    # Cholesky solve is exactly equivalent to torch.linalg.pinv here.
    if float(alpha) > 0.0:
        chol = jsp_linalg.cho_factor(cov, lower=True)
        w_full = jsp_linalg.cho_solve(chol, xty)
    else:
        # TODO(synk): SVD-based pinv kept only for the degenerate alpha == 0 case.
        w_full = jnp.linalg.pinv(cov) @ xty

    w = w_full[:d]                                      # (D, K)
    if fit_intercept:
        bias = w_full[d:d1]                             # (1, K)
    else:
        bias = jnp.zeros((1, k), jnp.float32)

    # Kernel 2: y_hat = Xq @ W + b, streaming Xq directly (no copy, no padding).
    return _predict(query_x, w, bias)


# ----------------------------------------------------------------------------
# Pure-JAX reference (mirrors the PyTorch module semantics exactly)
# ----------------------------------------------------------------------------
def _reference(support_x, support_y, query_x, alpha=1.0, fit_intercept=True):
    def add_intercept(x):
        ones = jnp.ones(x.shape[:-1] + (1,), dtype=x.dtype)
        return jnp.concatenate([x, ones], axis=-1)

    if fit_intercept:
        support_x = add_intercept(support_x)
        query_x = add_intercept(query_x)
    cov = support_x.T @ support_x + alpha * jnp.eye(support_x.shape[1],
                                                    dtype=support_x.dtype)
    prec = jnp.linalg.pinv(cov)
    return query_x @ prec @ (support_x.T @ support_y)


if __name__ == "__main__":
    key = jax.random.PRNGKey(0)
    k1, k2, k3 = jax.random.split(key, 3)

    N, M, D, K = 8, 8, 32, 4  # support samples, query samples, features, targets
    support_x = jax.random.normal(k1, (N, D), dtype=jnp.float32)
    support_y = jax.random.normal(k2, (N, K), dtype=jnp.float32)
    query_x = jax.random.normal(k3, (M, D), dtype=jnp.float32)

    y_hat = ridge_regression_header(support_x, support_y, query_x,
                                    alpha=1.0, fit_intercept=True)
    y_hat = jax.block_until_ready(y_hat)

    y_ref = _reference(support_x, support_y, query_x,
                       alpha=1.0, fit_intercept=True)
    assert y_hat.shape == (M, K)
    assert jnp.allclose(y_hat, y_ref, atol=1e-3, rtol=1e-3), (
        "mismatch vs reference")

    print("KERNEL_OK")
</pallas_src>

<mosaic_0001>
module attributes {stable_mosaic.version = 11 : i64} {
  func.func @_gram_kernel(%arg0: i32, %arg1: i32, %arg2: memref<8x128xf32, #tpu.memory_space<vmem>>, %arg3: memref<128x128xf32, #tpu.memory_space<vmem>>) attributes {dimension_semantics = [#tpu.dimension_semantics<parallel>, #tpu.dimension_semantics<arbitrary>], iteration_bounds = array<i64: 1, 1>, scalar_prefetch = 0 : i64, scratch_operands = 0 : i64, tpu.core_type = #tpu.core_type<tc>, window_params = [{transform_indices = @transform_0, window_bounds = array<i64: 8, 128>}, {transform_indices = @transform_1, window_bounds = array<i64: 128, 128>}]} {
    %c0_i32 = arith.constant 0 : i32
    %0 = arith.cmpi eq, %arg1, %c0_i32 : i32
    %1 = arith.extui %0 : i1 to i32
    %c0_i32_0 = arith.constant 0 : i32
    %2 = arith.cmpi ne, %1, %c0_i32_0 : i32
    scf.if %2 {
      %cst_6 = arith.constant 0.000000e+00 : f32
      %8 = vector.broadcast %cst_6 : f32 to vector<128x128xf32>
      %c0_7 = arith.constant 0 : index
      %c0_8 = arith.constant 0 : index
      %9 = vector.load %arg3[%c0_7, %c0_8] : memref<128x128xf32, #tpu.memory_space<vmem>>, vector<128x128xf32>
      tpu.vector_store %arg3[%c0_7, %c0_8], %8 {strides = array<i32>} : memref<128x128xf32, #tpu.memory_space<vmem>>, vector<128x128xf32>,
    } else {
    }
    %c0 = arith.constant 0 : index
    %c0_1 = arith.constant 0 : index
    %3 = vector.load %arg2[%c0, %c0_1] : memref<8x128xf32, #tpu.memory_space<vmem>>, vector<8x128xf32>
    %c0_2 = arith.constant 0 : index
    %c0_3 = arith.constant 0 : index
    %4 = vector.load %arg3[%c0_2, %c0_3] : memref<128x128xf32, #tpu.memory_space<vmem>>, vector<128x128xf32>
    %cst = arith.constant dense<0.000000e+00> : vector<128x128xf32>
    %5 = tpu.matmul %3, %3, %cst {dimension_numbers = #tpu.dot_dimension_numbers<[0], [0], [1], [1], [0, 1, 1, 1], [], []>} : vector<8x128xf32>, vector<8x128xf32>, vector<128x128xf32> -> vector<128x128xf32>
    %6 = arith.addf %4, %5 : vector<128x128xf32>
    %c0_4 = arith.constant 0 : index
    %c0_5 = arith.constant 0 : index
    %7 = vector.load %arg3[%c0_4, %c0_5] : memref<128x128xf32, #tpu.memory_space<vmem>>, vector<128x128xf32>
    tpu.vector_store %arg3[%c0_4, %c0_5], %6 {strides = array<i32>} : memref<128x128xf32, #tpu.memory_space<vmem>>, vector<128x128xf32>,
    return
  }
  func.func @transform_0(%arg0: i32, %arg1: i32) -> (i32, i32) {
    %c1_i32 = arith.constant 1 : i32
    %0 = arith.muli %arg0, %c1_i32 : i32
    %1 = arith.addi %0, %arg1 : i32
    %c0_i32 = arith.constant 0 : i32
    %c0_i32_0 = arith.constant 0 : i32
    return %1, %c0_i32 : i32, i32
  }
  func.func @transform_1(%arg0: i32, %arg1: i32) -> (i32, i32) {
    %c0_i32 = arith.constant 0 : i32
    %c0_i32_0 = arith.constant 0 : i32
    return %arg0, %c0_i32 : i32, i32
  }
}

</mosaic_0001>

<llo_original>
// kernel: tpu_custom_call.1
$region0: #{tpu_custom_call.1}
  #allocation0 [shape = 'u32[]', space=smem, size = 0x4, offset = 0x4, fixed_abs, tag = 'smem constant byte address 0x4 - core index']
  #allocation1 [shape = 'u32[144,128]{1,0:T(1,128)}', space=vmem, size = 0x12000, scoped, tag = 'internal scratch']
  %s0 = inlined_call_operand.hbm [shape: f32[8,128], index: 0, kind: input, shape index: {}]
  %s1 = inlined_call_operand.hbm [shape: f32[128,128], index: 1, kind: output, shape index: {}]
  %s2 = sld [smem:[#allocation0]]
  $region22: #{tpu_custom_call.1} parent=0
    _
  %s4 = ssub.s32 1, %s2
  %s5 = scalar_select 0, %s4, %s2
  $region1: #{tpu_custom_call.1} parent=0
    #allocation2 [shape = 'u8[4096]{0}', space=vmem, size = 0x1000, scoped, tag = 'input window, operand 0, single buffered']
    #allocation3 [shape = 's32[1]{0}', space=sflag, size = 0x4, scoped, tag = 'scoped memory for tpu_custom_call.1']
    #allocation4 [shape = 's32[1]{0}', space=sflag, size = 0x4, scoped, tag = 'scoped memory for tpu_custom_call.1']
    #allocation5 [shape = 'u8[65536]{0}', space=vmem, size = 0x10000, scoped, tag = 'output window, operand 0, single buffered']
    %6 = vsyncpa [#allocation3], 0
    %7 = vsyncpa [#allocation4], 0
    // Predicated region
    $region2: #{tpu_custom_call.1} parent=1 // pred_check
      _
    $region3: #{tpu_custom_call.1} parent=1 // pred_check_branch
      %9 = sbr.rel (0) target = $region5
    $region4: #{tpu_custom_call.1} parent=1 // pred_region
      %s10 = sadd.s32 0, 0
      %s12 = ssub.s32 128, 128
      %13 = vsyncadd [#allocation3], %s12
      %s14 = smul.addr %s10, 128
      %s15 = scalar_lea.hbm %s0, %s14
      %s17 = sshll.u32 [#allocation2], 4
      %s18 = int_to_ptr.vmem [resolvable:$true] %s17
      %20 = dma.hbm_to_vmem [thread:$0]  %s15, 128, %s18, [#allocation3]
    $region5: #{tpu_custom_call.1} parent=1 // pred_fallthru
      _
    // Predicated region
    $region6: #{tpu_custom_call.1} parent=1 // pred_check
      _
    $region7: #{tpu_custom_call.1} parent=1 // pred_check_branch
      %22 = sbr.rel (0) target = $region9
    $region8: #{tpu_custom_call.1} parent=1 // pred_region
      %23 = dma.done [#allocation3], 128
    $region9: #{tpu_custom_call.1} parent=1 // pred_fallthru
      _
    %s24 = sadd.s32 0, 0
    %p25 = scmp.eq.s32.totalorder 0, 0
    // Predicated region
    $region10: #{tpu_custom_call.1} parent=1 // pred_check
      %p26 = pneg %p25
    $region11: #{tpu_custom_call.1} parent=1 // pred_check_branch
      %28 = sbr.rel (%p26) target = $region13
    $region12: #{tpu_custom_call.1} parent=1 // pred_region
      %29 = vst [vmem:[#allocation5] sm:$0xff] 0.0
      %30 = vst [vmem:[#allocation5 + $0x8] sm:$0xff] 0.0
      %31 = vst [vmem:[#allocation5 + $0x10] sm:$0xff] 0.0
      %32 = vst [vmem:[#allocation5 + $0x18] sm:$0xff] 0.0
      %33 = vst [vmem:[#allocation5 + $0x20] sm:$0xff] 0.0
      %34 = vst [vmem:[#allocation5 + $0x28] sm:$0xff] 0.0
      %35 = vst [vmem:[#allocation5 + $0x30] sm:$0xff] 0.0
      %36 = vst [vmem:[#allocation5 + $0x38] sm:$0xff] 0.0
      %37 = vst [vmem:[#allocation5 + $0x40] sm:$0xff] 0.0
      %38 = vst [vmem:[#allocation5 + $0x48] sm:$0xff] 0.0
      %39 = vst [vmem:[#allocation5 + $0x50] sm:$0xff] 0.0
      %40 = vst [vmem:[#allocation5 + $0x58] sm:$0xff] 0.0
      %41 = vst [vmem:[#allocation5 + $0x60] sm:$0xff] 0.0
      %42 = vst [vmem:[#allocation5 + $0x68] sm:$0xff] 0.0
      %43 = vst [vmem:[#allocation5 + $0x70] sm:$0xff] 0.0
      %44 = vst [vmem:[#allocation5 + $0x78] sm:$0xff] 0.0
    $region13: #{tpu_custom_call.1} parent=1 // pred_fallthru
      _
    %v45 = vld [vmem:[#allocation2] sm:$0xff]
    %v46 = vld [vmem:[#allocation5] sm:$0xff]
    %v47 = vld [vmem:[#allocation5 + $0x8] sm:$0xff]
    %v48 = vld [vmem:[#allocation5 + $0x10] sm:$0xff]
    %v49 = vld [vmem:[#allocation5 + $0x18] sm:$0xff]
    %v50 = vld [vmem:[#allocation5 + $0x20] sm:$0xff]
    %v51 = vld [vmem:[#allocation5 + $0x28] sm:$0xff]
    %v52 = vld [vmem:[#allocation5 + $0x30] sm:$0xff]
    %v53 = vld [vmem:[#allocation5 + $0x38] sm:$0xff]
    %v54 = vld [vmem:[#allocation5 + $0x40] sm:$0xff]
    %v55 = vld [vmem:[#allocation5 + $0x48] sm:$0xff]
    %v56 = vld [vmem:[#allocation5 + $0x50] sm:$0xff]
    %v57 = vld [vmem:[#allocation5 + $0x58] sm:$0xff]
    %v58 = vld [vmem:[#allocation5 + $0x60] sm:$0xff]
    %v59 = vld [vmem:[#allocation5 + $0x68] sm:$0xff]
    %v60 = vld [vmem:[#allocation5 + $0x70] sm:$0xff]
    %v61 = vld [vmem:[#allocation5 + $0x78] sm:$0xff]
    %62 = vxpose.xlu0.b32.start [1/16] %v45, 128
    %63 = vxpose.xlu0.b32.cont [2/16] 0.0, 128
    %64 = vxpose.xlu0.b32.cont [3/16] 0.0, 128
    %65 = vxpose.xlu0.b32.cont [4/16] 0.0, 128
    %66 = vxpose.xlu0.b32.cont [5/16] 0.0, 128
    %67 = vxpose.xlu0.b32.cont [6/16] 0.0, 128
    %68 = vxpose.xlu0.b32.cont [7/16] 0.0, 128
    %69 = vxpose.xlu0.b32.cont [8/16] 0.0, 128
    %70 = vxpose.xlu0.b32.cont [9/16] 0.0, 128
    %71 = vxpose.xlu0.b32.cont [10/16] 0.0, 128
    %72 = vxpose.xlu0.b32.cont [11/16] 0.0, 128
    %73 = vxpose.xlu0.b32.cont [12/16] 0.0, 128
    %74 = vxpose.xlu0.b32.cont [13/16] 0.0, 128
    %75 = vxpose.xlu0.b32.cont [14/16] 0.0, 128
    %76 = vxpose.xlu0.b32.cont [15/16] 0.0, 128
    %77 = vxpose.xlu0.b32.end [16/16] 0.0, 128
    %v78 = vpop.trf.xlu0
    %v79 = vpop.trf.xlu0
    %v80 = vpop.trf.xlu0
    %v81 = vpop.trf.xlu0
    %v82 = vpop.trf.xlu0
    %v83 = vpop.trf.xlu0
    %v84 = vpop.trf.xlu0
    %v85 = vpop.trf.xlu0
    %v86 = vpop.trf.xlu0
    %v87 = vpop.trf.xlu0
    %v88 = vpop.trf.xlu0
    %v89 = vpop.trf.xlu0
    %v90 = vpop.trf.xlu0
    %v91 = vpop.trf.xlu0
    %v92 = vpop.trf.xlu0
    %v93 = vpop.trf.xlu0
    %vm94 = vcmask 64512
    %v96 = vsel %vm94, %v78, 0
    %v99 = vsel %vm94, %v79, 0
    %v102 = vsel %vm94, %v80, 0
    %v105 = vsel %vm94, %v81, 0
    %v108 = vsel %vm94, %v82, 0
    %v111 = vsel %vm94, %v83, 0
    %v114 = vsel %vm94, %v84, 0
    %v117 = vsel %vm94, %v85, 0
    %v120 = vsel %vm94, %v86, 0
    %v123 = vsel %vm94, %v87, 0
    %v126 = vsel %vm94, %v88, 0
    %v129 = vsel %vm94, %v89, 0
    %v132 = vsel %vm94, %v90, 0
    %v135 = vsel %vm94, %v91, 0
    %v138 = vsel %vm94, %v92, 0
    %v141 = vsel %vm94, %v93, 0
    %143 = vmatprep.subr.mxu0 0.0
    %144 = vmatpush1.msra.mxu0 %v45
    %145 = vmatprep.subr.mxu0 0.0
    %146 = vmatpush1.msra.mxu0 0.0
    %147 = vmatprep.subr.mxu0 0.0
    %148 = vmatpush1.msra.mxu0 0.0
    %149 = vmatprep.subr.mxu0 0.0
    %150 = vmatpush1.msra.mxu0 0.0
    %151 = vmatprep.subr.mxu0 0.0
    %152 = vmatpush1.msra.mxu0 0.0
    %153 = vmatprep.subr.mxu0 0.0
    %154 = vmatpush1.msra.mxu0 0.0
    %155 = vmatprep.subr.mxu0 0.0
    %156 = vmatpush1.msra.mxu0 0.0
    %157 = vmatprep.subr.mxu0 0.0
    %158 = vmatpush1.msra.mxu0 0.0
    %159 = vmatprep.subr.mxu0 0.0
    %160 = vmatpush1.msra.mxu0 0.0
    %161 = vmatprep.subr.mxu0 0.0
    %162 = vmatpush1.msra.mxu0 0.0
    %163 = vmatprep.subr.mxu0 0.0
    %164 = vmatpush1.msra.mxu0 0.0
    %165 = vmatprep.subr.mxu0 0.0
    %166 = vmatpush1.msra.mxu0 0.0
    %167 = vmatprep.subr.mxu0 0.0
    %168 = vmatpush1.msra.mxu0 0.0
    %169 = vmatprep.subr.mxu0 0.0
    %170 = vmatpush1.msra.mxu0 0.0
    %171 = vmatprep.subr.mxu0 0.0
    %172 = vmatpush1.msra.mxu0 0.0
    %173 = vmatprep.subr.mxu0 0.0
    %174 = vmatpush1.msra.mxu0 0.0
    %175 = vmatprep.subr.mxu0 0.0
    %176 = vmatpush1.msra.mxu0 0.0
    %177 = vmatprep.subr.mxu0 0.0
    %178 = vmatpush1.msra.mxu0 0.0
    %179 = vmatprep.subr.mxu0 0.0
    %180 = vmatpush1.msra.mxu0 0.0
    %181 = vmatprep.subr.mxu0 0.0
    %182 = vmatpush1.msra.mxu0 0.0
    %183 = vmatprep.subr.mxu0 0.0
    %184 = vmatpush1.msra.mxu0 0.0
    %185 = vmatprep.subr.mxu0 0.0
    %186 = vmatpush1.msra.mxu0 0.0
    %187 = vmatprep.subr.mxu0 0.0
    %188 = vmatpush1.msra.mxu0 0.0
    %189 = vmatprep.subr.mxu0 0.0
    %190 = vmatpush1.msra.mxu0 0.0
    %191 = vmatprep.subr.mxu0 0.0
    %192 = vmatpush1.msra.mxu0 0.0
    %193 = vmatprep.subr.mxu0 0.0
    %194 = vmatpush1.msra.mxu0 0.0
    %195 = vmatprep.subr.mxu0 0.0
    %196 = vmatpush1.msra.mxu0 0.0
    %197 = vmatprep.subr.mxu0 0.0
    %198 = vmatpush1.msra.mxu0 0.0
    %199 = vmatprep.subr.mxu0 0.0
    %200 = vmatpush1.msra.mxu0 0.0
    %201 = vmatprep.subr.mxu0 0.0
    %202 = vmatpush1.msra.mxu0 0.0
    %203 = vmatprep.subr.mxu0 0.0
    %204 = vmatpush1.msra.mxu0 0.0
    %205 = vmatprep.subr.mxu0 0.0
    %206 = vmatpush1.msra.mxu0 0.0
    %207 = vmatprep.mubr.f32.mxu0 0.0
    %208 = vmatmul.mubr.f32.gmra.mrb[0].mxu0 %v96
    %v209 = vpop.f32.mrb[0].mxu0
    %v210 = vadd.f32 0.0, %v209
    %v211 = vpop.f32.mrb[0].mxu0
    %212 = vmatprep.mubr.f32.mxu0 0.0
    %213 = vmatmul.mubr.f32.gmra.mrb[0].mxu0 %v99
    %v214 = vpop.f32.mrb[0].mxu0
    %v215 = vadd.f32 0.0, %v214
    %v216 = vpop.f32.mrb[0].mxu0
    %217 = vmatprep.mubr.f32.mxu0 0.0
    %218 = vmatmul.mubr.f32.gmra.mrb[0].mxu0 %v102
    %v219 = vpop.f32.mrb[0].mxu0
    %v220 = vadd.f32 0.0, %v219
    %v221 = vpop.f32.mrb[0].mxu0
    %222 = vmatprep.mubr.f32.mxu0 0.0
    %223 = vmatmul.mubr.f32.gmra.mrb[0].mxu0 %v105
    %v224 = vpop.f32.mrb[0].mxu0
    %v225 = vadd.f32 0.0, %v224
    %v226 = vpop.f32.mrb[0].mxu0
    %227 = vmatprep.mubr.f32.mxu0 0.0
    %228 = vmatmul.mubr.f32.gmra.mrb[0].mxu0 %v108
    %v229 = vpop.f32.mrb[0].mxu0
    %v230 = vadd.f32 0.0, %v229
    %v231 = vpop.f32.mrb[0].mxu0
    %232 = vmatprep.mubr.f32.mxu0 0.0
    %233 = vmatmul.mubr.f32.gmra.mrb[0].mxu0 %v111
    %v234 = vpop.f32.mrb[0].mxu0
    %v235 = vadd.f32 0.0, %v234
    %v236 = vpop.f32.mrb[0].mxu0
    %237 = vmatprep.mubr.f32.mxu0 0.0
    %238 = vmatmul.mubr.f32.gmra.mrb[0].mxu0 %v114
    %v239 = vpop.f32.mrb[0].mxu0
    %v240 = vadd.f32 0.0, %v239
    %v241 = vpop.f32.mrb[0].mxu0
    %242 = vmatprep.mubr.f32.mxu0 0.0
    %243 = vmatmul.mubr.f32.gmra.mrb[0].mxu0 %v117
    %v244 = vpop.f32.mrb[0].mxu0
    %v245 = vadd.f32 0.0, %v244
    %v246 = vpop.f32.mrb[0].mxu0
    %247 = vmatprep.mubr.f32.mxu0 0.0
    %248 = vmatmul.mubr.f32.gmra.mrb[0].mxu0 %v120
    %v249 = vpop.f32.mrb[0].mxu0
    %v250 = vadd.f32 0.0, %v249
    %v251 = vpop.f32.mrb[0].mxu0
    %252 = vmatprep.mubr.f32.mxu0 0.0
    %253 = vmatmul.mubr.f32.gmra.mrb[0].mxu0 %v123
    %v254 = vpop.f32.mrb[0].mxu0
    %v255 = vadd.f32 0.0, %v254
    %v256 = vpop.f32.mrb[0].mxu0
    %257 = vmatprep.mubr.f32.mxu0 0.0
    %258 = vmatmul.mubr.f32.gmra.mrb[0].mxu0 %v126
    %v259 = vpop.f32.mrb[0].mxu0
    %v260 = vadd.f32 0.0, %v259
    %v261 = vpop.f32.mrb[0].mxu0
    %262 = vmatprep.mubr.f32.mxu0 0.0
    %263 = vmatmul.mubr.f32.gmra.mrb[0].mxu0 %v129
    %v264 = vpop.f32.mrb[0].mxu0
    %v265 = vadd.f32 0.0, %v264
    %v266 = vpop.f32.mrb[0].mxu0
    %267 = vmatprep.mubr.f32.mxu0 0.0
    %268 = vmatmul.mubr.f32.gmra.mrb[0].mxu0 %v132
    %v269 = vpop.f32.mrb[0].mxu0
    %v270 = vadd.f32 0.0, %v269
    %v271 = vpop.f32.mrb[0].mxu0
    %272 = vmatprep.mubr.f32.mxu0 0.0
    %273 = vmatmul.mubr.f32.gmra.mrb[0].mxu0 %v135
    %v274 = vpop.f32.mrb[0].mxu0
    %v275 = vadd.f32 0.0, %v274
    %v276 = vpop.f32.mrb[0].mxu0
    %277 = vmatprep.mubr.f32.mxu0 0.0
    %278 = vmatmul.mubr.f32.gmra.mrb[0].mxu0 %v138
    %v279 = vpop.f32.mrb[0].mxu0
    %v280 = vadd.f32 0.0, %v279
    %v281 = vpop.f32.mrb[0].mxu0
    %282 = vmatprep.mubr.f32.mxu0 0.0
    %283 = vmatmul.mubr.f32.gmra.mrb[0].mxu0 %v141
    %v284 = vpop.f32.mrb[0].mxu0
    %v285 = vadd.f32 0.0, %v284
    %v286 = vpop.f32.mrb[0].mxu0
    %287 = vdwg.mxu0
    %v288 = vadd.f32 %v46, %v210
    %v289 = vadd.f32 %v47, %v215
    %v290 = vadd.f32 %v48, %v220
    %v291 = vadd.f32 %v49, %v225
    %v292 = vadd.f32 %v50, %v230
    %v293 = vadd.f32 %v51, %v235
    %v294 = vadd.f32 %v52, %v240
    %v295 = vadd.f32 %v53, %v245
    %v296 = vadd.f32 %v54, %v250
    %v297 = vadd.f32 %v55, %v255
    %v298 = vadd.f32 %v56, %v260
    %v299 = vadd.f32 %v57, %v265
    %v300 = vadd.f32 %v58, %v270
    %v301 = vadd.f32 %v59, %v275
    %v302 = vadd.f32 %v60, %v280
    %v303 = vadd.f32 %v61, %v285
    %304 = vst [vmem:[#allocation5] sm:$0xff] %v288
    %305 = vst [vmem:[#allocation5 + $0x8] sm:$0xff] %v289
    %306 = vst [vmem:[#allocation5 + $0x10] sm:$0xff] %v290
    %307 = vst [vmem:[#allocation5 + $0x18] sm:$0xff] %v291
    %308 = vst [vmem:[#allocation5 + $0x20] sm:$0xff] %v292
    %309 = vst [vmem:[#allocation5 + $0x28] sm:$0xff] %v293
    %310 = vst [vmem:[#allocation5 + $0x30] sm:$0xff] %v294
    %311 = vst [vmem:[#allocation5 + $0x38] sm:$0xff] %v295
    %312 = vst [vmem:[#allocation5 + $0x40] sm:$0xff] %v296
    %313 = vst [vmem:[#allocation5 + $0x48] sm:$0xff] %v297
    %314 = vst [vmem:[#allocation5 + $0x50] sm:$0xff] %v298
    %315 = vst [vmem:[#allocation5 + $0x58] sm:$0xff] %v299
    %316 = vst [vmem:[#allocation5 + $0x60] sm:$0xff] %v300
    %317 = vst [vmem:[#allocation5 + $0x68] sm:$0xff] %v301
    %318 = vst [vmem:[#allocation5 + $0x70] sm:$0xff] %v302
    %319 = vst [vmem:[#allocation5 + $0x78] sm:$0xff] %v303
    // Predicated region
    $region14: #{tpu_custom_call.1} parent=1 // pred_check
      _
    $region15: #{tpu_custom_call.1} parent=1 // pred_check_branch
      %321 = sbr.rel (0) target = $region17
    $region16: #{tpu_custom_call.1} parent=1 // pred_region
      %s323 = ssub.s32 2048, 2048
      %324 = vsyncadd [#allocation4], %s323
      %s325 = sshll.u32 [#allocation5], 4
      %s326 = int_to_ptr.vmem [resolvable:$true] %s325
      %331 = dma.vmem_to_hbm [thread:$0]  %s326, 2048, %s1, [#allocation4], 128, 128, 8
    $region17: #{tpu_custom_call.1} parent=1 // pred_fallthru
      _
    // Predicated region
    $region18: #{tpu_custom_call.1} parent=1 // pred_check
      _
    $region19: #{tpu_custom_call.1} parent=1 // pred_check_branch
      %333 = sbr.rel (0) target = $region21
    $region20: #{tpu_custom_call.1} parent=1 // pred_region
      %334 = dma.done [#allocation4], 2048
    $region21: #{tpu_custom_call.1} parent=1 // pred_fallthru
      _
    %335 = vsyncpa [#allocation3], 1
    %336 = vsyncpa [#allocation4], 1

</llo_original>
